<compile_context>
chip_gen: v7x
topology: tpu7x:2x2x1
jax: 0.10.0
libtpu: 0.0.40
codegen_flags: <defaults>
</compile_context>

<pallas_src>
import jax
import jax.numpy as jnp
import numpy as np
from jax.experimental import pallas as pl
from jax.experimental.pallas import tpu as pltpu

OBS_DIM = 16
ACT_DIM = 8
HIDDEN = [256, 256, 256]
SUBLANE = 8
TARGET_ROWS = 1024     # MLP rows processed per grid step (amortizes ~0.35 us/step)


def _round_up(x, m):
    return ((x + m - 1) // m) * m


def _choose_batch_tile(batch, n_act):
    """Obs rows per grid step; each step pushes tile * n_act rows through the MLP."""
    tile = max(TARGET_ROWS // max(n_act, 1), SUBLANE)
    tile = min(tile, _round_up(batch, SUBLANE))
    # v7x has two TensorCores: for big problems keep >= 2 grid steps so the
    # "parallel" batch axis can be sharded across both cores.  (No-op cost on
    # v5e/v6e since the per-step work stays >= TARGET_ROWS rows.)
    if batch * n_act >= 2 * TARGET_ROWS:
        tile = min(tile, _round_up(pl.cdiv(batch, 2), SUBLANE))
    return _round_up(max(tile, SUBLANE), SUBLANE)


# ---------------------------------------------------------------------------
# Pallas kernel: one batch tile of observations + all its actions.
#   layer0: relu(obs @ W0_obs  (computed once, reused across actions)
#                + act_r @ W0_act + b0)
#   layer1/2: relu(h @ W + b)        -- bf16 MXU operands, f32 accumulation
#   head:  q = sum(h * w3, lanes) + b3   -- VPU multiply + XLU lane reduce
# Output block is (1, n_actions, tb): each action writes a full lane-dense row.
# ---------------------------------------------------------------------------
def _qfunc_mlp_kernel(obs_ref, act_ref,
                      w0o_ref, w0a_ref, b0_ref,
                      w1_ref, b1_ref,
                      w2_ref, b2_ref,
                      w3_ref, b3_ref,
                      o_ref):
    n_act = o_ref.shape[1]
    obs = obs_ref[...].astype(jnp.bfloat16)                         # (tb, obs_dim)
    # Obs contribution to layer 0: computed once per batch tile, reused for
    # every action (this replaces the wrapper-side jnp.repeat of observations).
    h_obs = jnp.dot(obs, w0o_ref[...], preferred_element_type=jnp.float32)

    # n_actions is a small static int (e.g. 1..32) -> static unroll.
    # TODO(synk): for very large n_actions this unroll should become a second
    # grid axis instead of a Python loop.
    for r in range(n_act):
        if len(act_ref.shape) == 3:
            act = act_ref[:, r, :].astype(jnp.bfloat16)              # (tb, act_dim)
        else:
            act = act_ref[...].astype(jnp.bfloat16)
        h = h_obs + jnp.dot(act, w0a_ref[...], preferred_element_type=jnp.float32)
        h = jnp.maximum(h + b0_ref[...], 0.0)
        h = jnp.dot(h.astype(jnp.bfloat16), w1_ref[...],
                    preferred_element_type=jnp.float32)
        h = jnp.maximum(h + b1_ref[...], 0.0)
        h = jnp.dot(h.astype(jnp.bfloat16), w2_ref[...],
                    preferred_element_type=jnp.float32)
        h = jnp.maximum(h + b2_ref[...], 0.0)
        # 1-wide head: VPU multiply + lane reduction (no padded MXU matmul).
        q = jnp.sum(h * w3_ref[...], axis=-1, keepdims=True) + b3_ref[...]   # (tb, 1)
        # Lane-dense store: all q values of this (tile, action) land on lanes.
        o_ref[0, r, :] = q[:, 0]


def _qfunc_pallas(params, observations, actions):
    """observations: (B, obs_dim) f32; actions: (B, act_dim) or (B, R, act_dim) f32.
    Returns q of shape (B, R) float32 (R = 1 for 2-D actions)."""
    (w0o, w0a, b0), (w1, b1), (w2, b2), (w3, b3) = params
    assert observations.ndim == 2, "kernel supports 2-D observations"
    B, obs_dim = observations.shape
    if actions.ndim == 3 and actions.shape[1] == 1:
        actions = actions[:, 0, :]          # avoid sublane/lane padding waste for R=1
    n_act = actions.shape[1] if actions.ndim == 3 else 1
    act_dim = actions.shape[-1]
    h1, h2, h3 = w0o.shape[1], w1.shape[1], w2.shape[1]

    tb = _choose_batch_tile(B, n_act)
    n_tiles = pl.cdiv(B, tb)

    if actions.ndim == 3:
        act_spec = pl.BlockSpec((tb, n_act, act_dim), lambda i: (i, 0, 0))
    else:
        act_spec = pl.BlockSpec((tb, act_dim), lambda i: (i, 0))

    def const(arr):
        # Grid-invariant operand (weights / biases, all 2-D): constant
        # index_map keeps one copy resident in VMEM across the whole grid.
        return pl.BlockSpec(arr.shape, lambda i: (0, 0))

    weight_bytes = sum(int(p.size) * p.dtype.itemsize
                       for p in (w0o, w0a, b0, w1, b1, w2, b2, w3, b3))
    cost = pl.CostEstimate(
        flops=2 * B * obs_dim * h1
              + 2 * B * n_act * (act_dim * h1 + h1 * h2 + h2 * h3 + h3),
        transcendentals=0,
        bytes_accessed=B * obs_dim * 4 + B * n_act * act_dim * 4
                       + B * n_act * 4 + weight_bytes,
    )

    out = pl.pallas_call(
        _qfunc_mlp_kernel,
        out_shape=jax.ShapeDtypeStruct((n_tiles, n_act, tb), jnp.float32),
        grid_spec=pltpu.PrefetchScalarGridSpec(
            num_scalar_prefetch=0,
            grid=(n_tiles,),
            in_specs=[
                pl.BlockSpec((tb, obs_dim), lambda i: (i, 0)),   # obs tile (f32)
                act_spec,                                        # actions tile (f32)
                const(w0o), const(w0a), const(b0),
                const(w1), const(b1),
                const(w2), const(b2),
                const(w3), const(b3),
            ],
            out_specs=pl.BlockSpec((1, n_act, tb), lambda i: (i, 0, 0)),
        ),
        compiler_params=pltpu.CompilerParams(
            dimension_semantics=("parallel",)),                  # megacore over batch
        cost_estimate=cost,
    )(observations, actions, w0o, w0a, b0, w1, b1, w2, b2, w3, b3)

    # (n_tiles, n_act, tb) lane-dense slab -> (B, n_act).  4 B/row transpose;
    # padded tail rows (ragged last batch tile) are sliced away here.
    q = jnp.transpose(out, (0, 2, 1)).reshape(n_tiles * tb, n_act)
    return q[:B]


# ---------------------------------------------------------------------------
# Module forward (matches FullyConnectedQFunction.forward).
# ---------------------------------------------------------------------------
def q_function_forward(params, observations, actions):
    multiple_actions = actions.ndim == 3 and observations.ndim == 2
    q = _qfunc_pallas(params, observations, actions)   # (B, n_actions)
    if multiple_actions:
        return q                                        # == reshape(batch, -1)
    return q[:, 0]                                      # == .squeeze(-1)


# ---------------------------------------------------------------------------
# Parameter construction (deterministic, synthetic — no checkpoint load).
# Shapes follow util.MLP(dim_in=obs+act, dim_out=1, hidden=[256,256,256]);
# W0 is stored split into its observation / action row blocks.
# ---------------------------------------------------------------------------
def init_params(key, obs_dim, act_dim, hidden):
    d_in = obs_dim + act_dim
    dims = [d_in] + list(hidden) + [1]
    keys = jax.random.split(key, 2 * (len(dims) - 1))
    ortho = jax.nn.initializers.orthogonal()
    ws, bs = [], []
    for li, (din, dout) in enumerate(zip(dims[:-1], dims[1:])):
        # TODO(synk): same orthogonal-init family as torch nn.init.orthogonal_,
        # but not bit-exact (different RNG stream); no checkpoint loading here.
        ws.append(ortho(keys[2 * li], (din, dout), jnp.float32))
        bs.append(0.05 * jax.random.normal(keys[2 * li + 1], (1, dout), jnp.float32))
    w0, w1, w2, w3 = ws
    b0, b1, b2, b3 = bs
    return (
        (w0[:obs_dim].astype(jnp.bfloat16),      # W0_obs (obs_dim, 256) bf16
         w0[obs_dim:].astype(jnp.bfloat16),      # W0_act (act_dim, 256) bf16
         b0),                                    # (1, 256) f32
        (w1.astype(jnp.bfloat16), b1),
        (w2.astype(jnp.bfloat16), b2),
        (w3.reshape(1, -1), b3),                 # head row (1, 256) f32, b3 (1, 1) f32
    )


# Pure-JAX reference of the same math (bf16 MXU operands, f32 accumulation,
# f32 head reduction).
def _reference(params, obs2d, act2d):
    (w0o, w0a, b0), (w1, b1), (w2, b2), (w3, b3) = params
    h = (jnp.dot(obs2d.astype(jnp.bfloat16), w0o, preferred_element_type=jnp.float32)
         + jnp.dot(act2d.astype(jnp.bfloat16), w0a, preferred_element_type=jnp.float32))
    h = jnp.maximum(h + b0, 0.0)
    h = jnp.maximum(jnp.dot(h.astype(jnp.bfloat16), w1,
                            preferred_element_type=jnp.float32) + b1, 0.0)
    h = jnp.maximum(jnp.dot(h.astype(jnp.bfloat16), w2,
                            preferred_element_type=jnp.float32) + b2, 0.0)
    return jnp.sum(h * w3, axis=-1) + b3[0, 0]


if __name__ == "__main__":
    key = jax.random.PRNGKey(0)
    k_par, k_obs, k_act2, k_act3, k_obs_l, k_act_l = jax.random.split(key, 6)

    params = init_params(k_par, OBS_DIM, ACT_DIM, HIDDEN)

    batch, n_rep = 2, 4
    observations = jax.random.normal(k_obs, (batch, OBS_DIM), jnp.float32)
    actions_2d = jax.random.normal(k_act2, (batch, ACT_DIM), jnp.float32)
    actions_3d = jax.random.normal(k_act3, (batch, n_rep, ACT_DIM), jnp.float32)

    # Single-action path: q shape (batch,)
    q1 = jax.block_until_ready(q_function_forward(params, observations, actions_2d))
    # Multiple-action path: q shape (batch, n_rep)
    q2 = jax.block_until_ready(q_function_forward(params, observations, actions_3d))

    ref1 = _reference(params, observations, actions_2d)
    obs_rep = jnp.repeat(observations[:, None, :], n_rep, axis=1).reshape(-1, OBS_DIM)
    ref2 = _reference(params, obs_rep, actions_3d.reshape(-1, ACT_DIM)).reshape(batch, n_rep)

    assert q1.shape == (batch,)
    assert q2.shape == (batch, n_rep)
    np.testing.assert_allclose(np.asarray(q1), np.asarray(ref1), rtol=2e-2, atol=2e-2)
    np.testing.assert_allclose(np.asarray(q2), np.asarray(ref2), rtol=2e-2, atol=2e-2)

    # Larger check: multi-step "parallel" grid (2 batch tiles of 256) and a
    # ragged last batch tile (300 = 256 + 44 rows), multi-action reuse of obs.
    big_b, big_rep = 300, 4
    obs_l = jax.random.normal(k_obs_l, (big_b, OBS_DIM), jnp.float32)
    act_l = jax.random.normal(k_act_l, (big_b, big_rep, ACT_DIM), jnp.float32)
    q3 = jax.block_until_ready(q_function_forward(params, obs_l, act_l))
    obs_l_rep = jnp.repeat(obs_l[:, None, :], big_rep, axis=1).reshape(-1, OBS_DIM)
    ref3 = _reference(params, obs_l_rep, act_l.reshape(-1, ACT_DIM)).reshape(big_b, big_rep)
    assert q3.shape == (big_b, big_rep)
    np.testing.assert_allclose(np.asarray(q3), np.asarray(ref3), rtol=2e-2, atol=2e-2)

    print("KERNEL_OK")
</pallas_src>

<mosaic_0001>
module attributes {stable_mosaic.version = 11 : i64} {
  func.func @_qfunc_mlp_kernel(%arg0: i32, %arg1: memref<8x16xf32, #tpu.memory_space<vmem>>, %arg2: memref<8x8xf32, #tpu.memory_space<vmem>>, %arg3: memref<16x256xbf16, #tpu.memory_space<vmem>>, %arg4: memref<8x256xbf16, #tpu.memory_space<vmem>>, %arg5: memref<1x256xf32, #tpu.memory_space<vmem>>, %arg6: memref<256x256xbf16, #tpu.memory_space<vmem>>, %arg7: memref<1x256xf32, #tpu.memory_space<vmem>>, %arg8: memref<256x256xbf16, #tpu.memory_space<vmem>>, %arg9: memref<1x256xf32, #tpu.memory_space<vmem>>, %arg10: memref<1x256xf32, #tpu.memory_space<vmem>>, %arg11: memref<1x1xf32, #tpu.memory_space<vmem>>, %arg12: memref<1x1x8xf32, #tpu.memory_space<vmem>>) attributes {dimension_semantics = [#tpu.dimension_semantics<parallel>], iteration_bounds = array<i64: 1>, scalar_prefetch = 0 : i64, scratch_operands = 0 : i64, tpu.core_type = #tpu.core_type<tc>, window_params = [{transform_indices = @transform_0, window_bounds = array<i64: 8, 16>}, {transform_indices = @transform_1, window_bounds = array<i64: 8, 8>}, {pipeline_mode = #tpu.pipeline_mode<synchronous>, transform_indices = @transform_2, window_bounds = array<i64: 16, 256>}, {pipeline_mode = #tpu.pipeline_mode<synchronous>, transform_indices = @transform_3, window_bounds = array<i64: 8, 256>}, {pipeline_mode = #tpu.pipeline_mode<synchronous>, transform_indices = @transform_4, window_bounds = array<i64: 1, 256>}, {pipeline_mode = #tpu.pipeline_mode<synchronous>, transform_indices = @transform_5, window_bounds = array<i64: 256, 256>}, {pipeline_mode = #tpu.pipeline_mode<synchronous>, transform_indices = @transform_6, window_bounds = array<i64: 1, 256>}, {pipeline_mode = #tpu.pipeline_mode<synchronous>, transform_indices = @transform_7, window_bounds = array<i64: 256, 256>}, {pipeline_mode = #tpu.pipeline_mode<synchronous>, transform_indices = @transform_8, window_bounds = array<i64: 1, 256>}, {pipeline_mode = #tpu.pipeline_mode<synchronous>, transform_indices = @transform_9, window_bounds = array<i64: 1, 256>}, {pipeline_mode = #tpu.pipeline_mode<synchronous>, transform_indices = @transform_10, window_bounds = array<i64: 1, 1>}, {transform_indices = @transform_11, window_bounds = array<i64: 1, 1, 8>}]} {
    %c0 = arith.constant 0 : index
    %c0_0 = arith.constant 0 : index
    %0 = vector.load %arg1[%c0, %c0_0] : memref<8x16xf32, #tpu.memory_space<vmem>>, vector<8x16xf32>
    %1 = arith.truncf %0 : vector<8x16xf32> to vector<8x16xbf16>
    %c0_1 = arith.constant 0 : index
    %c0_2 = arith.constant 0 : index
    %2 = vector.load %arg3[%c0_1, %c0_2] : memref<16x256xbf16, #tpu.memory_space<vmem>>, vector<16x256xbf16>
    %cst = arith.constant dense<0.000000e+00> : vector<8x256xf32>
    %3 = tpu.matmul %1, %2, %cst {dimension_numbers = #tpu.dot_dimension_numbers<[1], [0], [0], [1], [0, 0, 1, 1], [], []>} : vector<8x16xbf16>, vector<16x256xbf16>, vector<8x256xf32> -> vector<8x256xf32>
    %c0_3 = arith.constant 0 : index
    %c0_4 = arith.constant 0 : index
    %4 = vector.load %arg2[%c0_3, %c0_4] : memref<8x8xf32, #tpu.memory_space<vmem>>, vector<8x8xf32>
    %5 = arith.truncf %4 : vector<8x8xf32> to vector<8x8xbf16>
    %c0_5 = arith.constant 0 : index
    %c0_6 = arith.constant 0 : index
    %6 = vector.load %arg4[%c0_5, %c0_6] : memref<8x256xbf16, #tpu.memory_space<vmem>>, vector<8x256xbf16>
    %cst_7 = arith.constant dense<0.000000e+00> : vector<8x256xf32>
    %7 = tpu.matmul %5, %6, %cst_7 {dimension_numbers = #tpu.dot_dimension_numbers<[1], [0], [0], [1], [0, 0, 1, 1], [], []>} : vector<8x8xbf16>, vector<8x256xbf16>, vector<8x256xf32> -> vector<8x256xf32>
    %8 = arith.addf %3, %7 : vector<8x256xf32>
    %c0_8 = arith.constant 0 : index
    %c0_9 = arith.constant 0 : index
    %9 = vector.load %arg5[%c0_8, %c0_9] : memref<1x256xf32, #tpu.memory_space<vmem>>, vector<1x256xf32>
    %10 = vector.broadcast %9 : vector<1x256xf32> to vector<8x256xf32>
    %11 = arith.addf %8, %10 : vector<8x256xf32>
    %cst_10 = arith.constant 0.000000e+00 : f32
    %12 = vector.broadcast %cst_10 : f32 to vector<8x256xf32>
    %13 = arith.maximumf %11, %12 : vector<8x256xf32>
    %14 = arith.truncf %13 : vector<8x256xf32> to vector<8x256xbf16>
    %c0_11 = arith.constant 0 : index
    %c0_12 = arith.constant 0 : index
    %15 = vector.load %arg6[%c0_11, %c0_12] : memref<256x256xbf16, #tpu.memory_space<vmem>>, vector<256x256xbf16>
    %cst_13 = arith.constant dense<0.000000e+00> : vector<8x256xf32>
    %16 = tpu.matmul %14, %15, %cst_13 {dimension_numbers = #tpu.dot_dimension_numbers<[1], [0], [0], [1], [0, 0, 1, 1], [], []>} : vector<8x256xbf16>, vector<256x256xbf16>, vector<8x256xf32> -> vector<8x256xf32>
    %c0_14 = arith.constant 0 : index
    %c0_15 = arith.constant 0 : index
    %17 = vector.load %arg7[%c0_14, %c0_15] : memref<1x256xf32, #tpu.memory_space<vmem>>, vector<1x256xf32>
    %18 = vector.broadcast %17 : vector<1x256xf32> to vector<8x256xf32>
    %19 = arith.addf %16, %18 : vector<8x256xf32>
    %cst_16 = arith.constant 0.000000e+00 : f32
    %20 = vector.broadcast %cst_16 : f32 to vector<8x256xf32>
    %21 = arith.maximumf %19, %20 : vector<8x256xf32>
    %22 = arith.truncf %21 : vector<8x256xf32> to vector<8x256xbf16>
    %c0_17 = arith.constant 0 : index
    %c0_18 = arith.constant 0 : index
    %23 = vector.load %arg8[%c0_17, %c0_18] : memref<256x256xbf16, #tpu.memory_space<vmem>>, vector<256x256xbf16>
    %cst_19 = arith.constant dense<0.000000e+00> : vector<8x256xf32>
    %24 = tpu.matmul %22, %23, %cst_19 {dimension_numbers = #tpu.dot_dimension_numbers<[1], [0], [0], [1], [0, 0, 1, 1], [], []>} : vector<8x256xbf16>, vector<256x256xbf16>, vector<8x256xf32> -> vector<8x256xf32>
    %c0_20 = arith.constant 0 : index
    %c0_21 = arith.constant 0 : index
    %25 = vector.load %arg9[%c0_20, %c0_21] : memref<1x256xf32, #tpu.memory_space<vmem>>, vector<1x256xf32>
    %26 = vector.broadcast %25 : vector<1x256xf32> to vector<8x256xf32>
    %27 = arith.addf %24, %26 : vector<8x256xf32>
    %cst_22 = arith.constant 0.000000e+00 : f32
    %28 = vector.broadcast %cst_22 : f32 to vector<8x256xf32>
    %29 = arith.maximumf %27, %28 : vector<8x256xf32>
    %c0_23 = arith.constant 0 : index
    %c0_24 = arith.constant 0 : index
    %30 = vector.load %arg10[%c0_23, %c0_24] : memref<1x256xf32, #tpu.memory_space<vmem>>, vector<1x256xf32>
    %31 = vector.broadcast %30 : vector<1x256xf32> to vector<8x256xf32>
    %32 = arith.mulf %29, %31 : vector<8x256xf32>
    %cst_25 = arith.constant dense<0.000000e+00> : vector<8xf32>
    %33 = vector.multi_reduction <add>, %32, %cst_25 [1] : vector<8x256xf32> to vector<8xf32>
    %34 = vector.shape_cast %33 : vector<8xf32> to vector<8x1xf32>
    %c0_26 = arith.constant 0 : index
    %c0_27 = arith.constant 0 : index
    %35 = vector.load %arg11[%c0_26, %c0_27] : memref<1x1xf32, #tpu.memory_space<vmem>>, vector<1x1xf32>
    %36 = vector.broadcast %35 : vector<1x1xf32> to vector<8x1xf32>
    %37 = arith.addf %34, %36 : vector<8x1xf32>
    %38 = vector.shape_cast %37 : vector<8x1xf32> to vector<8xf32>
    %c0_28 = arith.constant 0 : index
    %c0_29 = arith.constant 0 : index
    %c0_30 = arith.constant 0 : index
    %39 = vector.load %arg12[%c0_28, %c0_29, %c0_30] : memref<1x1x8xf32, #tpu.memory_space<vmem>>, vector<1x1x8xf32>
    %40 = vector.shape_cast %39 : vector<1x1x8xf32> to vector<8xf32>
    %41 = vector.shape_cast %38 : vector<8xf32> to vector<1x1x8xf32>
    tpu.vector_store %arg12[%c0_28, %c0_29, %c0_30], %41 {strides = array<i32>} : memref<1x1x8xf32, #tpu.memory_space<vmem>>, vector<1x1x8xf32>,
    return
  }
  func.func @transform_0(%arg0: i32) -> (i32, i32) {
    %c0_i32 = arith.constant 0 : i32
    %c0_i32_0 = arith.constant 0 : i32
    return %arg0, %c0_i32 : i32, i32
  }
  func.func @transform_1(%arg0: i32) -> (i32, i32) {
    %c0_i32 = arith.constant 0 : i32
    %c0_i32_0 = arith.constant 0 : i32
    return %arg0, %c0_i32 : i32, i32
  }
  func.func @transform_2(%arg0: i32) -> (i32, i32) {
    %c0_i32 = arith.constant 0 : i32
    %c0_i32_0 = arith.constant 0 : i32
    %c0_i32_1 = arith.constant 0 : i32
    return %c0_i32, %c0_i32_0 : i32, i32
  }
  func.func @transform_3(%arg0: i32) -> (i32, i32) {
    %c0_i32 = arith.constant 0 : i32
    %c0_i32_0 = arith.constant 0 : i32
    %c0_i32_1 = arith.constant 0 : i32
    return %c0_i32, %c0_i32_0 : i32, i32
  }
  func.func @transform_4(%arg0: i32) -> (i32, i32) {
    %c0_i32 = arith.constant 0 : i32
    %c0_i32_0 = arith.constant 0 : i32
    %c0_i32_1 = arith.constant 0 : i32
    return %c0_i32, %c0_i32_0 : i32, i32
  }
  func.func @transform_5(%arg0: i32) -> (i32, i32) {
    %c0_i32 = arith.constant 0 : i32
    %c0_i32_0 = arith.constant 0 : i32
    %c0_i32_1 = arith.constant 0 : i32
    return %c0_i32, %c0_i32_0 : i32, i32
  }
  func.func @transform_6(%arg0: i32) -> (i32, i32) {
    %c0_i32 = arith.constant 0 : i32
    %c0_i32_0 = arith.constant 0 : i32
    %c0_i32_1 = arith.constant 0 : i32
    return %c0_i32, %c0_i32_0 : i32, i32
  }
  func.func @transform_7(%arg0: i32) -> (i32, i32) {
    %c0_i32 = arith.constant 0 : i32
    %c0_i32_0 = arith.constant 0 : i32
    %c0_i32_1 = arith.constant 0 : i32
    return %c0_i32, %c0_i32_0 : i32, i32
  }
  func.func @transform_8(%arg0: i32) -> (i32, i32) {
    %c0_i32 = arith.constant 0 : i32
    %c0_i32_0 = arith.constant 0 : i32
    %c0_i32_1 = arith.constant 0 : i32
    return %c0_i32, %c0_i32_0 : i32, i32
  }
  func.func @transform_9(%arg0: i32) -> (i32, i32) {
    %c0_i32 = arith.constant 0 : i32
    %c0_i32_0 = arith.constant 0 : i32
    %c0_i32_1 = arith.constant 0 : i32
    return %c0_i32, %c0_i32_0 : i32, i32
  }
  func.func @transform_10(%arg0: i32) -> (i32, i32) {
    %c0_i32 = arith.constant 0 : i32
    %c0_i32_0 = arith.constant 0 : i32
    %c0_i32_1 = arith.constant 0 : i32
    return %c0_i32, %c0_i32_0 : i32, i32
  }
  func.func @transform_11(%arg0: i32) -> (i32, i32, i32) {
    %c0_i32 = arith.constant 0 : i32
    %c0_i32_0 = arith.constant 0 : i32
    %c0_i32_1 = arith.constant 0 : i32
    return %arg0, %c0_i32, %c0_i32_0 : i32, i32, i32
  }
}

</mosaic_0001>

<llo_original>
// kernel: tpu_custom_call.1
$region0: #{tpu_custom_call.1}
  #allocation0 [shape = 'u32[]', space=smem, size = 0x4, offset = 0x4, fixed_abs, tag = 'smem constant byte address 0x4 - core index']
  #allocation1 [shape = 'u32[144,128]{1,0:T(1,128)}', space=vmem, size = 0x12000, scoped, tag = 'internal scratch']
  #allocation2 [shape = 'f32[1,1]{1,0:T(1,128)S(1)}', space=vmem, size = 0x200, scoped, tag = 'scoped memory for tpu_custom_call.1']
  %s0 = inlined_call_operand.vmem [shape: f32[2,16], index: 0, kind: input, shape index: {}]
  %s1 = inlined_call_operand.vmem [shape: f32[2,8], index: 1, kind: input, shape index: {}]
  %s2 = inlined_call_operand.hbm [shape: bf16[16,256], index: 2, kind: input, shape index: {}]
  %s3 = inlined_call_operand.vmem [shape: bf16[8,256], index: 3, kind: input, shape index: {}]
  %s4 = inlined_call_operand.vmem [shape: f32[1,256], index: 4, kind: input, shape index: {}]
  %s5 = inlined_call_operand.hbm [shape: bf16[256,256], index: 5, kind: input, shape index: {}]
  %s6 = inlined_call_operand.vmem [shape: f32[1,256], index: 6, kind: input, shape index: {}]
  %s7 = inlined_call_operand.hbm [shape: bf16[256,256], index: 7, kind: input, shape index: {}]
  %s8 = inlined_call_operand.vmem [shape: f32[1,256], index: 8, kind: input, shape index: {}]
  %s9 = inlined_call_operand.vmem [shape: f32[1,256], index: 9, kind: input, shape index: {}]
  %s10 = inlined_call_operand.<no memory space> [shape: f32[1,1], index: 10, kind: input, shape index: {}]
  %s11 = inlined_call_operand.hbm [shape: f32[1,1,8], index: 11, kind: output, shape index: {}]
  %s12 = sld [smem:[#allocation0]]
  $region66: #{tpu_custom_call.1} parent=0
    _
  %s14 = ssub.s32 1, %s12
  %s15 = scalar_select 0, %s14, %s12
  %v16 = vstv %s10
  %17 = vst [vmem:[#allocation2] sm:$0x1] %v16
  $region1: #{tpu_custom_call.1} parent=0
    #allocation3 [shape = 'u8[8192]{0}', space=vmem, size = 0x2000, scoped, tag = 'input window, operand 2, single buffered']
    #allocation4 [shape = 's32[1]{0}', space=sflag, size = 0x4, scoped, tag = 'scoped memory for tpu_custom_call.1']
    #allocation5 [shape = 's32[1]{0}', space=sflag, size = 0x4, scoped, tag = 'scoped memory for tpu_custom_call.1']
    #allocation6 [shape = 'u8[131072]{0}', space=vmem, size = 0x20000, scoped, tag = 'input window, operand 5, single buffered']
    #allocation7 [shape = 's32[1]{0}', space=sflag, size = 0x4, scoped, tag = 'scoped memory for tpu_custom_call.1']
    #allocation8 [shape = 'u8[131072]{0}', space=vmem, size = 0x20000, scoped, tag = 'input window, operand 7, single buffered']
    #allocation9 [shape = 'u8[512]{0}', space=vmem, size = 0x400, scoped, tag = 'output window, operand 0, single buffered']
    %18 = vsyncpa [#allocation4], 0
    %19 = vsyncpa [#allocation7], 0
    %20 = vsyncpa [#allocation5], 0
    // Predicated region
    $region2: #{tpu_custom_call.1} parent=1 // pred_check
      _
    $region3: #{tpu_custom_call.1} parent=1 // pred_check_branch
      %22 = sbr.rel (0) target = $region5
    $region4: #{tpu_custom_call.1} parent=1 // pred_region
      _
    $region5: #{tpu_custom_call.1} parent=1 // pred_fallthru
      _
    // Predicated region
    $region6: #{tpu_custom_call.1} parent=1 // pred_check
      _
    $region7: #{tpu_custom_call.1} parent=1 // pred_check_branch
      %24 = sbr.rel (0) target = $region9
    $region8: #{tpu_custom_call.1} parent=1 // pred_region
      _
    $region9: #{tpu_custom_call.1} parent=1 // pred_fallthru
      _
    // Predicated region
    $region10: #{tpu_custom_call.1} parent=1 // pred_check
      _
    $region11: #{tpu_custom_call.1} parent=1 // pred_check_branch
      %26 = sbr.rel (0) target = $region13
    $region12: #{tpu_custom_call.1} parent=1 // pred_region
      %s28 = ssub.s32 256, 256
      %29 = vsyncadd [#allocation4], %s28
      %s30 = sshll.u32 [#allocation3], 4
      %s31 = int_to_ptr.vmem [resolvable:$true] %s30
      %36 = dma.hbm_to_vmem [thread:$0]  %s2, 256, %s31, [#allocation4], 128, 128, 8
    $region13: #{tpu_custom_call.1} parent=1 // pred_fallthru
      _
    // Predicated region
    $region14: #{tpu_custom_call.1} parent=1 // pred_check
      _
    $region15: #{tpu_custom_call.1} parent=1 // pred_check_branch
      %38 = sbr.rel (0) target = $region17
    $region16: #{tpu_custom_call.1} parent=1 // pred_region
      _
    $region17: #{tpu_custom_call.1} parent=1 // pred_fallthru
      _
    // Predicated region
    $region18: #{tpu_custom_call.1} parent=1 // pred_check
      _
    $region19: #{tpu_custom_call.1} parent=1 // pred_check_branch
      %40 = sbr.rel (0) target = $region21
    $region20: #{tpu_custom_call.1} parent=1 // pred_region
      _
    $region21: #{tpu_custom_call.1} parent=1 // pred_fallthru
      _
    // Predicated region
    $region22: #{tpu_custom_call.1} parent=1 // pred_check
      _
    $region23: #{tpu_custom_call.1} parent=1 // pred_check_branch
      %42 = sbr.rel (0) target = $region25
    $region24: #{tpu_custom_call.1} parent=1 // pred_region
      %s44 = ssub.s32 4096, 4096
      %45 = vsyncadd [#allocation7], %s44
      %s46 = sshll.u32 [#allocation6], 4
      %s47 = int_to_ptr.vmem [resolvable:$true] %s46
      %52 = dma.hbm_to_vmem [thread:$0]  %s5, 4096, %s47, [#allocation7], 128, 128, 8
    $region25: #{tpu_custom_call.1} parent=1 // pred_fallthru
      _
    // Predicated region
    $region26: #{tpu_custom_call.1} parent=1 // pred_check
      _
    $region27: #{tpu_custom_call.1} parent=1 // pred_check_branch
      %54 = sbr.rel (0) target = $region29
    $region28: #{tpu_custom_call.1} parent=1 // pred_region
      _
    $region29: #{tpu_custom_call.1} parent=1 // pred_fallthru
      _
    // Predicated region
    $region30: #{tpu_custom_call.1} parent=1 // pred_check
      _
    $region31: #{tpu_custom_call.1} parent=1 // pred_check_branch
      %56 = sbr.rel (0) target = $region33
    $region32: #{tpu_custom_call.1} parent=1 // pred_region
      %s58 = ssub.s32 4096, 4096
      %59 = vsyncadd [#allocation7], %s58
      %s60 = sshll.u32 [#allocation8], 4
      %s61 = int_to_ptr.vmem [resolvable:$true] %s60
      %66 = dma.hbm_to_vmem [thread:$0]  %s7, 4096, %s61, [#allocation7], 128, 128, 8
    $region33: #{tpu_custom_call.1} parent=1 // pred_fallthru
      _
    // Predicated region
    $region34: #{tpu_custom_call.1} parent=1 // pred_check
      _
    $region35: #{tpu_custom_call.1} parent=1 // pred_check_branch
      %68 = sbr.rel (0) target = $region37
    $region36: #{tpu_custom_call.1} parent=1 // pred_region
      _
    $region37: #{tpu_custom_call.1} parent=1 // pred_fallthru
      _
    // Predicated region
    $region38: #{tpu_custom_call.1} parent=1 // pred_check
      _
    $region39: #{tpu_custom_call.1} parent=1 // pred_check_branch
      %70 = sbr.rel (0) target = $region41
    $region40: #{tpu_custom_call.1} parent=1 // pred_region
      _
    $region41: #{tpu_custom_call.1} parent=1 // pred_fallthru
      _
    // Predicated region
    $region42: #{tpu_custom_call.1} parent=1 // pred_check
      _
    $region43: #{tpu_custom_call.1} parent=1 // pred_check_branch
      %72 = sbr.rel (0) target = $region45
    $region44: #{tpu_custom_call.1} parent=1 // pred_region
      _
    $region45: #{tpu_custom_call.1} parent=1 // pred_fallthru
      _
    // Predicated region
    $region46: #{tpu_custom_call.1} parent=1 // pred_check
      _
    $region47: #{tpu_custom_call.1} parent=1 // pred_check_branch
      %74 = sbr.rel (0) target = $region49
    $region48: #{tpu_custom_call.1} parent=1 // pred_region
      %75 = dma.done [#allocation4], 256
    $region49: #{tpu_custom_call.1} parent=1 // pred_fallthru
      _
    // Predicated region
    $region50: #{tpu_custom_call.1} parent=1 // pred_check
      _
    $region51: #{tpu_custom_call.1} parent=1 // pred_check_branch
      %77 = sbr.rel (0) target = $region53
    $region52: #{tpu_custom_call.1} parent=1 // pred_region
      %78 = dma.done [#allocation7], 4096
    $region53: #{tpu_custom_call.1} parent=1 // pred_fallthru
      _
    // Predicated region
    $region54: #{tpu_custom_call.1} parent=1 // pred_check
      _
    $region55: #{tpu_custom_call.1} parent=1 // pred_check_branch
      %80 = sbr.rel (0) target = $region57
    $region56: #{tpu_custom_call.1} parent=1 // pred_region
      %81 = dma.done [#allocation7], 4096
    $region57: #{tpu_custom_call.1} parent=1 // pred_fallthru
      _
    %v83 = vld [vmem:[%s0] sm:$0xff]
    %v84 = vpack.c.bf16 %v83, %v83
    %v85 = vld [vmem:[#allocation3] sm:$0xff]
    %v86 = vld [vmem:[#allocation3 + $0x8] sm:$0xff]
    %v87 = vld [vmem:[%s1] sm:$0xff]
    %v88 = vpack.c.bf16 %v87, %v87
    %v89 = vld [vmem:[%s3] sm:$0xff]
    %v91 = vunpack.c.l.b16 %v89
    %v92 = vunpack.c.h.b16 %v89
    %v93 = vpack.c.b16 %v91, %v91
    %v94 = vpack.c.b16 %v92, %v92
    %vm95 = vcmask 64512
    %v97 = vsel %vm95, %v88, 0
    %vm99 = vcmask 1043456
    %v101 = vsel %vm99, %v93, 0
    %v104 = vsel %vm99, %v94, 0
    %106 = vmatprep.subr.bf16.mxu0 %v104
    %107 = vmatpush1.bf16.msra.mxu0 %v101
    %108 = vmatprep.subr.bf16.mxu0 0
    %109 = vmatpush1.bf16.msra.mxu0 0
    %110 = vmatprep.subr.bf16.mxu0 0
    %111 = vmatpush1.bf16.msra.mxu0 0
    %112 = vmatprep.subr.bf16.mxu0 0
    %113 = vmatpush1.bf16.msra.mxu0 0
    %114 = vmatprep.subr.bf16.mxu0 0
    %115 = vmatpush1.bf16.msra.mxu0 0
    %116 = vmatprep.subr.bf16.mxu0 0
    %117 = vmatpush1.bf16.msra.mxu0 0
    %118 = vmatprep.subr.bf16.mxu0 0
    %119 = vmatpush1.bf16.msra.mxu0 0
    %120 = vmatprep.subr.bf16.mxu0 0
    %121 = vmatpush1.bf16.msra.mxu0 0
    %122 = vmatprep.subr.bf16.mxu0 0
    %123 = vmatpush1.bf16.msra.mxu0 0
    %124 = vmatprep.subr.bf16.mxu0 0
    %125 = vmatpush1.bf16.msra.mxu0 0
    %126 = vmatprep.subr.bf16.mxu0 0
    %127 = vmatpush1.bf16.msra.mxu0 0
    %128 = vmatprep.subr.bf16.mxu0 0
    %129 = vmatpush1.bf16.msra.mxu0 0
    %130 = vmatprep.subr.bf16.mxu0 0
    %131 = vmatpush1.bf16.msra.mxu0 0
    %132 = vmatprep.subr.bf16.mxu0 0
    %133 = vmatpush1.bf16.msra.mxu0 0
    %134 = vmatprep.subr.bf16.mxu0 0
    %135 = vmatpush1.bf16.msra.mxu0 0
    %136 = vmatprep.subr.bf16.mxu0 0
    %137 = vmatpush1.bf16.msra.mxu0 0
    %138 = vmatprep.mubr.bf16.mxu0 0
    %139 = vmatmul.mubr.bf16.gmra.mrb[0].mxu0 %v97
    %v140 = vpop.f32.mrb[0].mxu0
    %v141 = vadd.f32 0.0, %v140
    %v142 = vpop.f32.mrb[0].mxu0
    %v143 = vadd.f32 0.0, %v142
    %v144 = vpop.f32.mrb[0].mxu0
    %v145 = vpop.f32.mrb[0].mxu0
    %146 = vdwg.mxu0
    %v149 = vunpack.c.l.b16 %v85
    %v150 = vunpack.c.h.b16 %v85
    %v151 = vunpack.c.l.b16 %v86
    %v152 = vunpack.c.h.b16 %v86
    %v153 = vpack.c.b16 %v151, %v149
    %v154 = vpack.c.b16 %v152, %v150
    %vm157 = vcmask 130048
    %v159 = vsel %vm157, %v84, 0
    %161 = vmatprep.subr.bf16.mxu0 %v154
    %162 = vmatpush1.bf16.msra.mxu0 %v153
    %163 = vmatprep.subr.bf16.mxu0 0
    %164 = vmatpush1.bf16.msra.mxu0 0
    %165 = vmatprep.subr.bf16.mxu0 0
    %166 = vmatpush1.bf16.msra.mxu0 0
    %167 = vmatprep.subr.bf16.mxu0 0
    %168 = vmatpush1.bf16.msra.mxu0 0
    %169 = vmatprep.subr.bf16.mxu0 0
    %170 = vmatpush1.bf16.msra.mxu0 0
    %171 = vmatprep.subr.bf16.mxu0 0
    %172 = vmatpush1.bf16.msra.mxu0 0
    %173 = vmatprep.subr.bf16.mxu0 0
    %174 = vmatpush1.bf16.msra.mxu0 0
    %175 = vmatprep.subr.bf16.mxu0 0
    %176 = vmatpush1.bf16.msra.mxu0 0
    %177 = vmatprep.subr.bf16.mxu0 0
    %178 = vmatpush1.bf16.msra.mxu0 0
    %179 = vmatprep.subr.bf16.mxu0 0
    %180 = vmatpush1.bf16.msra.mxu0 0
    %181 = vmatprep.subr.bf16.mxu0 0
    %182 = vmatpush1.bf16.msra.mxu0 0
    %183 = vmatprep.subr.bf16.mxu0 0
    %184 = vmatpush1.bf16.msra.mxu0 0
    %185 = vmatprep.subr.bf16.mxu0 0
    %186 = vmatpush1.bf16.msra.mxu0 0
    %187 = vmatprep.subr.bf16.mxu0 0
    %188 = vmatpush1.bf16.msra.mxu0 0
    %189 = vmatprep.subr.bf16.mxu0 0
    %190 = vmatpush1.bf16.msra.mxu0 0
    %191 = vmatprep.subr.bf16.mxu0 0
    %192 = vmatpush1.bf16.msra.mxu0 0
    %193 = vmatprep.mubr.bf16.mxu0 0
    %194 = vmatmul.mubr.bf16.gmra.mrb[0].mxu0 %v159
    %v195 = vpop.f32.mrb[0].mxu0
    %v196 = vadd.f32 %v141, %v195
    %v197 = vpop.f32.mrb[0].mxu0
    %v198 = vadd.f32 %v143, %v197
    %v199 = vpop.f32.mrb[0].mxu0
    %v200 = vpop.f32.mrb[0].mxu0
    %201 = vdwg.mxu0
    %v202 = vld [vmem:[%s4] sm:$0x3]
    %v204 = vlaneseq
    %v205 = vshrl.u32 %v204, 7
    %v206 = vsub.s32 0, %v205
    %v207 = vrot.slane %v202, %v206
    %v208 = vlaneseq
    %v209 = vshrl.u32 %v208, 7
    %v210 = vsub.s32 1, %v209
    %v211 = vrot.slane %v202, %v210
    %v214 = vadd.f32 %v196, %v207
    %v215 = vadd.f32 %v198, %v211
    %v216 = vmax.f32 %v214, 0.0
    %v217 = vmax.f32 %v215, 0.0
    %v218 = vpack.c.bf16 %v216, %v216
    %v219 = vpack.c.bf16 %v217, %v217
    %v220 = vld [vmem:[#allocation6] sm:$0xff]
    %v221 = vld [vmem:[#allocation6 + $0x8] sm:$0xff]
    %v222 = vld [vmem:[#allocation6 + $0x10] sm:$0xff]
    %v223 = vld [vmem:[#allocation6 + $0x18] sm:$0xff]
    %v224 = vld [vmem:[#allocation6 + $0x20] sm:$0xff]
    %v225 = vld [vmem:[#allocation6 + $0x28] sm:$0xff]
    %v226 = vld [vmem:[#allocation6 + $0x30] sm:$0xff]
    %v227 = vld [vmem:[#allocation6 + $0x38] sm:$0xff]
    %v228 = vld [vmem:[#allocation6 + $0x40] sm:$0xff]
    %v229 = vld [vmem:[#allocation6 + $0x48] sm:$0xff]
    %v230 = vld [vmem:[#allocation6 + $0x50] sm:$0xff]
    %v231 = vld [vmem:[#allocation6 + $0x58] sm:$0xff]
    %v232 = vld [vmem:[#allocation6 + $0x60] sm:$0xff]
    %v233 = vld [vmem:[#allocation6 + $0x68] sm:$0xff]
    %v234 = vld [vmem:[#allocation6 + $0x70] sm:$0xff]
    %v235 = vld [vmem:[#allocation6 + $0x78] sm:$0xff]
    %v236 = vld [vmem:[#allocation6 + $0x80] sm:$0xff]
    %v237 = vld [vmem:[#allocation6 + $0x88] sm:$0xff]
    %v238 = vld [vmem:[#allocation6 + $0x90] sm:$0xff]
    %v239 = vld [vmem:[#allocation6 + $0x98] sm:$0xff]
    %v240 = vld [vmem:[#allocation6 + $0xa0] sm:$0xff]
    %v241 = vld [vmem:[#allocation6 + $0xa8] sm:$0xff]
    %v242 = vld [vmem:[#allocation6 + $0xb0] sm:$0xff]
    %v243 = vld [vmem:[#allocation6 + $0xb8] sm:$0xff]
    %v244 = vld [vmem:[#allocation6 + $0xc0] sm:$0xff]
    %v245 = vld [vmem:[#allocation6 + $0xc8] sm:$0xff]
    %v246 = vld [vmem:[#allocation6 + $0xd0] sm:$0xff]
    %v247 = vld [vmem:[#allocation6 + $0xd8] sm:$0xff]
    %v248 = vld [vmem:[#allocation6 + $0xe0] sm:$0xff]
    %v249 = vld [vmem:[#allocation6 + $0xe8] sm:$0xff]
    %v250 = vld [vmem:[#allocation6 + $0xf0] sm:$0xff]
    %v251 = vld [vmem:[#allocation6 + $0xf8] sm:$0xff]
    %v252 = vld [vmem:[%s6] sm:$0x3]
    %v254 = vlaneseq
    %v255 = vshrl.u32 %v254, 7
    %v256 = vsub.s32 0, %v255
    %v257 = vrot.slane %v252, %v256
    %v258 = vlaneseq
    %v259 = vshrl.u32 %v258, 7
    %v260 = vsub.s32 1, %v259
    %v261 = vrot.slane %v252, %v260
    %v296 = vunpack.c.l.b16 %v220
    %v297 = vunpack.c.h.b16 %v220
    %v298 = vunpack.c.l.b16 %v221
    %v299 = vunpack.c.h.b16 %v221
    %v300 = vunpack.c.l.b16 %v222
    %v301 = vunpack.c.h.b16 %v222
    %v302 = vunpack.c.l.b16 %v223
    %v303 = vunpack.c.h.b16 %v223
    %v304 = vunpack.c.l.b16 %v224
    %v305 = vunpack.c.h.b16 %v224
    %v306 = vunpack.c.l.b16 %v225
    %v307 = vunpack.c.h.b16 %v225
    %v308 = vunpack.c.l.b16 %v226
    %v309 = vunpack.c.h.b16 %v226
    %v310 = vunpack.c.l.b16 %v227
    %v311 = vunpack.c.h.b16 %v227
    %v312 = vunpack.c.l.b16 %v228
    %v313 = vunpack.c.h.b16 %v228
    %v314 = vunpack.c.l.b16 %v229
    %v315 = vunpack.c.h.b16 %v229
    %v316 = vunpack.c.l.b16 %v230
    %v317 = vunpack.c.h.b16 %v230
    %v318 = vunpack.c.l.b16 %v231
    %v319 = vunpack.c.h.b16 %v231
    %v320 = vunpack.c.l.b16 %v232
    %v321 = vunpack.c.h.b16 %v232
    %v322 = vunpack.c.l.b16 %v233
    %v323 = vunpack.c.h.b16 %v233
    %v324 = vunpack.c.l.b16 %v234
    %v325 = vunpack.c.h.b16 %v234
    %v326 = vunpack.c.l.b16 %v235
    %v327 = vunpack.c.h.b16 %v235
    %v328 = vunpack.c.l.b16 %v236
    %v329 = vunpack.c.h.b16 %v236
    %v330 = vunpack.c.l.b16 %v237
    %v331 = vunpack.c.h.b16 %v237
    %v332 = vunpack.c.l.b16 %v238
    %v333 = vunpack.c.h.b16 %v238
    %v334 = vunpack.c.l.b16 %v239
    %v335 = vunpack.c.h.b16 %v239
    %v336 = vunpack.c.l.b16 %v240
    %v337 = vunpack.c.h.b16 %v240
    %v338 = vunpack.c.l.b16 %v241
    %v339 = vunpack.c.h.b16 %v241
    %v340 = vunpack.c.l.b16 %v242
    %v341 = vunpack.c.h.b16 %v242
    %v342 = vunpack.c.l.b16 %v243
    %v343 = vunpack.c.h.b16 %v243
    %v344 = vunpack.c.l.b16 %v244
    %v345 = vunpack.c.h.b16 %v244
    %v346 = vunpack.c.l.b16 %v245
    %v347 = vunpack.c.h.b16 %v245
    %v348 = vunpack.c.l.b16 %v246
    %v349 = vunpack.c.h.b16 %v246
    %v350 = vunpack.c.l.b16 %v247
    %v351 = vunpack.c.h.b16 %v247
    %v352 = vunpack.c.l.b16 %v248
    %v353 = vunpack.c.h.b16 %v248
    %v354 = vunpack.c.l.b16 %v249
    %v355 = vunpack.c.h.b16 %v249
    %v356 = vunpack.c.l.b16 %v250
    %v357 = vunpack.c.h.b16 %v250
    %v358 = vunpack.c.l.b16 %v251
    %v359 = vunpack.c.h.b16 %v251
    %v360 = vpack.c.b16 %v298, %v296
    %v361 = vpack.c.b16 %v299, %v297
    %v362 = vpack.c.b16 %v302, %v300
    %v363 = vpack.c.b16 %v303, %v301
    %v364 = vpack.c.b16 %v306, %v304
    %v365 = vpack.c.b16 %v307, %v305
    %v366 = vpack.c.b16 %v310, %v308
    %v367 = vpack.c.b16 %v311, %v309
    %v368 = vpack.c.b16 %v314, %v312
    %v369 = vpack.c.b16 %v315, %v313
    %v370 = vpack.c.b16 %v318, %v316
    %v371 = vpack.c.b16 %v319, %v317
    %v372 = vpack.c.b16 %v322, %v320
    %v373 = vpack.c.b16 %v323, %v321
    %v374 = vpack.c.b16 %v326, %v324
    %v375 = vpack.c.b16 %v327, %v325
    %v376 = vpack.c.b16 %v330, %v328
    %v377 = vpack.c.b16 %v331, %v329
    %v378 = vpack.c.b16 %v334, %v332
    %v379 = vpack.c.b16 %v335, %v333
    %v380 = vpack.c.b16 %v338, %v336
    %v381 = vpack.c.b16 %v339, %v337
    %v382 = vpack.c.b16 %v342, %v340
    %v383 = vpack.c.b16 %v343, %v341
    %v384 = vpack.c.b16 %v346, %v344
    %v385 = vpack.c.b16 %v347, %v345
    %v386 = vpack.c.b16 %v350, %v348
    %v387 = vpack.c.b16 %v351, %v349
    %v388 = vpack.c.b16 %v354, %v352
    %v389 = vpack.c.b16 %v355, %v353
    %v390 = vpack.c.b16 %v358, %v356
    %v391 = vpack.c.b16 %v359, %v357
    %424 = vmatprep.subr.bf16.mxu0 %v361
    %425 = vmatpush1.bf16.msra.mxu0 %v360
    %426 = vmatprep.subr.bf16.mxu0 %v363
    %427 = vmatpush1.bf16.msra.mxu0 %v362
    %428 = vmatprep.subr.bf16.mxu0 %v365
    %429 = vmatpush1.bf16.msra.mxu0 %v364
    %430 = vmatprep.subr.bf16.mxu0 %v367
    %431 = vmatpush1.bf16.msra.mxu0 %v366
    %432 = vmatprep.subr.bf16.mxu0 %v369
    %433 = vmatpush1.bf16.msra.mxu0 %v368
    %434 = vmatprep.subr.bf16.mxu0 %v371
    %435 = vmatpush1.bf16.msra.mxu0 %v370
    %436 = vmatprep.subr.bf16.mxu0 %v373
    %437 = vmatpush1.bf16.msra.mxu0 %v372
    %438 = vmatprep.subr.bf16.mxu0 %v375
    %439 = vmatpush1.bf16.msra.mxu0 %v374
    %440 = vmatprep.subr.bf16.mxu0 %v377
    %441 = vmatpush1.bf16.msra.mxu0 %v376
    %442 = vmatprep.subr.bf16.mxu0 %v379
    %443 = vmatpush1.bf16.msra.mxu0 %v378
    %444 = vmatprep.subr.bf16.mxu0 %v381
    %445 = vmatpush1.bf16.msra.mxu0 %v380
    %446 = vmatprep.subr.bf16.mxu0 %v383
    %447 = vmatpush1.bf16.msra.mxu0 %v382
    %448 = vmatprep.subr.bf16.mxu0 %v385
    %449 = vmatpush1.bf16.msra.mxu0 %v384
    %450 = vmatprep.subr.bf16.mxu0 %v387
    %451 = vmatpush1.bf16.msra.mxu0 %v386
    %452 = vmatprep.subr.bf16.mxu0 %v389
    %453 = vmatpush1.bf16.msra.mxu0 %v388
    %454 = vmatprep.subr.bf16.mxu0 %v391
    %455 = vmatpush1.bf16.msra.mxu0 %v390
    %456 = vmatprep.mubr.bf16.mxu0 %v219
    %457 = vmatmul.mubr.bf16.gmra.mrb[0].mxu0 %v218
    %v458 = vpop.f32.mrb[0].mxu0
    %v459 = vadd.f32 %v257, %v458
    %v460 = vpop.f32.mrb[0].mxu0
    %v461 = vadd.f32 %v261, %v460
    %v462 = vpop.f32.mrb[0].mxu0
    %v463 = vpop.f32.mrb[0].mxu0
    %464 = vdwg.mxu0
    %v465 = vmax.f32 %v459, 0.0
    %v466 = vmax.f32 %v461, 0.0
    %v467 = vpack.c.bf16 %v465, %v465
    %v468 = vpack.c.bf16 %v466, %v466
    %v469 = vld [vmem:[#allocation8] sm:$0xff]
    %v470 = vld [vmem:[#allocation8 + $0x8] sm:$0xff]
    %v471 = vld [vmem:[#allocation8 + $0x10] sm:$0xff]
    %v472 = vld [vmem:[#allocation8 + $0x18] sm:$0xff]
    %v473 = vld [vmem:[#allocation8 + $0x20] sm:$0xff]
    %v474 = vld [vmem:[#allocation8 + $0x28] sm:$0xff]
    %v475 = vld [vmem:[#allocation8 + $0x30] sm:$0xff]
    %v476 = vld [vmem:[#allocation8 + $0x38] sm:$0xff]
    %v477 = vld [vmem:[#allocation8 + $0x40] sm:$0xff]
    %v478 = vld [vmem:[#allocation8 + $0x48] sm:$0xff]
    %v479 = vld [vmem:[#allocation8 + $0x50] sm:$0xff]
    %v480 = vld [vmem:[#allocation8 + $0x58] sm:$0xff]
    %v481 = vld [vmem:[#allocation8 + $0x60] sm:$0xff]
    %v482 = vld [vmem:[#allocation8 + $0x68] sm:$0xff]
    %v483 = vld [vmem:[#allocation8 + $0x70] sm:$0xff]
    %v484 = vld [vmem:[#allocation8 + $0x78] sm:$0xff]
    %v485 = vld [vmem:[#allocation8 + $0x80] sm:$0xff]
    %v486 = vld [vmem:[#allocation8 + $0x88] sm:$0xff]
    %v487 = vld [vmem:[#allocation8 + $0x90] sm:$0xff]
    %v488 = vld [vmem:[#allocation8 + $0x98] sm:$0xff]
    %v489 = vld [vmem:[#allocation8 + $0xa0] sm:$0xff]
    %v490 = vld [vmem:[#allocation8 + $0xa8] sm:$0xff]
    %v491 = vld [vmem:[#allocation8 + $0xb0] sm:$0xff]
    %v492 = vld [vmem:[#allocation8 + $0xb8] sm:$0xff]
    %v493 = vld [vmem:[#allocation8 + $0xc0] sm:$0xff]
    %v494 = vld [vmem:[#allocation8 + $0xc8] sm:$0xff]
    %v495 = vld [vmem:[#allocation8 + $0xd0] sm:$0xff]
    %v496 = vld [vmem:[#allocation8 + $0xd8] sm:$0xff]
    %v497 = vld [vmem:[#allocation8 + $0xe0] sm:$0xff]
    %v498 = vld [vmem:[#allocation8 + $0xe8] sm:$0xff]
    %v499 = vld [vmem:[#allocation8 + $0xf0] sm:$0xff]
    %v500 = vld [vmem:[#allocation8 + $0xf8] sm:$0xff]
    %v501 = vld [vmem:[%s8] sm:$0x3]
    %v503 = vlaneseq
    %v504 = vshrl.u32 %v503, 7
    %v505 = vsub.s32 0, %v504
    %v506 = vrot.slane %v501, %v505
    %v507 = vlaneseq
    %v508 = vshrl.u32 %v507, 7
    %v509 = vsub.s32 1, %v508
    %v510 = vrot.slane %v501, %v509
    %v545 = vunpack.c.l.b16 %v469
    %v546 = vunpack.c.h.b16 %v469
    %v547 = vunpack.c.l.b16 %v470
    %v548 = vunpack.c.h.b16 %v470
    %v549 = vunpack.c.l.b16 %v471
    %v550 = vunpack.c.h.b16 %v471
    %v551 = vunpack.c.l.b16 %v472
    %v552 = vunpack.c.h.b16 %v472
    %v553 = vunpack.c.l.b16 %v473
    %v554 = vunpack.c.h.b16 %v473
    %v555 = vunpack.c.l.b16 %v474
    %v556 = vunpack.c.h.b16 %v474
    %v557 = vunpack.c.l.b16 %v475
    %v558 = vunpack.c.h.b16 %v475
    %v559 = vunpack.c.l.b16 %v476
    %v560 = vunpack.c.h.b16 %v476
    %v561 = vunpack.c.l.b16 %v477
    %v562 = vunpack.c.h.b16 %v477
    %v563 = vunpack.c.l.b16 %v478
    %v564 = vunpack.c.h.b16 %v478
    %v565 = vunpack.c.l.b16 %v479
    %v566 = vunpack.c.h.b16 %v479
    %v567 = vunpack.c.l.b16 %v480
    %v568 = vunpack.c.h.b16 %v480
    %v569 = vunpack.c.l.b16 %v481
    %v570 = vunpack.c.h.b16 %v481
    %v571 = vunpack.c.l.b16 %v482
    %v572 = vunpack.c.h.b16 %v482
    %v573 = vunpack.c.l.b16 %v483
    %v574 = vunpack.c.h.b16 %v483
    %v575 = vunpack.c.l.b16 %v484
    %v576 = vunpack.c.h.b16 %v484
    %v577 = vunpack.c.l.b16 %v485
    %v578 = vunpack.c.h.b16 %v485
    %v579 = vunpack.c.l.b16 %v486
    %v580 = vunpack.c.h.b16 %v486
    %v581 = vunpack.c.l.b16 %v487
    %v582 = vunpack.c.h.b16 %v487
    %v583 = vunpack.c.l.b16 %v488
    %v584 = vunpack.c.h.b16 %v488
    %v585 = vunpack.c.l.b16 %v489
    %v586 = vunpack.c.h.b16 %v489
    %v587 = vunpack.c.l.b16 %v490
    %v588 = vunpack.c.h.b16 %v490
    %v589 = vunpack.c.l.b16 %v491
    %v590 = vunpack.c.h.b16 %v491
    %v591 = vunpack.c.l.b16 %v492
    %v592 = vunpack.c.h.b16 %v492
    %v593 = vunpack.c.l.b16 %v493
    %v594 = vunpack.c.h.b16 %v493
    %v595 = vunpack.c.l.b16 %v494
    %v596 = vunpack.c.h.b16 %v494
    %v597 = vunpack.c.l.b16 %v495
    %v598 = vunpack.c.h.b16 %v495
    %v599 = vunpack.c.l.b16 %v496
    %v600 = vunpack.c.h.b16 %v496
    %v601 = vunpack.c.l.b16 %v497
    %v602 = vunpack.c.h.b16 %v497
    %v603 = vunpack.c.l.b16 %v498
    %v604 = vunpack.c.h.b16 %v498
    %v605 = vunpack.c.l.b16 %v499
    %v606 = vunpack.c.h.b16 %v499
    %v607 = vunpack.c.l.b16 %v500
    %v608 = vunpack.c.h.b16 %v500
    %v609 = vpack.c.b16 %v547, %v545
    %v610 = vpack.c.b16 %v548, %v546
    %v611 = vpack.c.b16 %v551, %v549
    %v612 = vpack.c.b16 %v552, %v550
    %v613 = vpack.c.b16 %v555, %v553
    %v614 = vpack.c.b16 %v556, %v554
    %v615 = vpack.c.b16 %v559, %v557
    %v616 = vpack.c.b16 %v560, %v558
    %v617 = vpack.c.b16 %v563, %v561
    %v618 = vpack.c.b16 %v564, %v562
    %v619 = vpack.c.b16 %v567, %v565
    %v620 = vpack.c.b16 %v568, %v566
    %v621 = vpack.c.b16 %v571, %v569
    %v622 = vpack.c.b16 %v572, %v570
    %v623 = vpack.c.b16 %v575, %v573
    %v624 = vpack.c.b16 %v576, %v574
    %v625 = vpack.c.b16 %v579, %v577
    %v626 = vpack.c.b16 %v580, %v578
    %v627 = vpack.c.b16 %v583, %v581
    %v628 = vpack.c.b16 %v584, %v582
    %v629 = vpack.c.b16 %v587, %v585
    %v630 = vpack.c.b16 %v588, %v586
    %v631 = vpack.c.b16 %v591, %v589
    %v632 = vpack.c.b16 %v592, %v590
    %v633 = vpack.c.b16 %v595, %v593
    %v634 = vpack.c.b16 %v596, %v594
    %v635 = vpack.c.b16 %v599, %v597
    %v636 = vpack.c.b16 %v600, %v598
    %v637 = vpack.c.b16 %v603, %v601
    %v638 = vpack.c.b16 %v604, %v602
    %v639 = vpack.c.b16 %v607, %v605
    %v640 = vpack.c.b16 %v608, %v606
    %673 = vmatprep.subr.bf16.mxu0 %v610
    %674 = vmatpush1.bf16.msra.mxu0 %v609
    %675 = vmatprep.subr.bf16.mxu0 %v612
    %676 = vmatpush1.bf16.msra.mxu0 %v611
    %677 = vmatprep.subr.bf16.mxu0 %v614
    %678 = vmatpush1.bf16.msra.mxu0 %v613
    %679 = vmatprep.subr.bf16.mxu0 %v616
    %680 = vmatpush1.bf16.msra.mxu0 %v615
    %681 = vmatprep.subr.bf16.mxu0 %v618
    %682 = vmatpush1.bf16.msra.mxu0 %v617
    %683 = vmatprep.subr.bf16.mxu0 %v620
    %684 = vmatpush1.bf16.msra.mxu0 %v619
    %685 = vmatprep.subr.bf16.mxu0 %v622
    %686 = vmatpush1.bf16.msra.mxu0 %v621
    %687 = vmatprep.subr.bf16.mxu0 %v624
    %688 = vmatpush1.bf16.msra.mxu0 %v623
    %689 = vmatprep.subr.bf16.mxu0 %v626
    %690 = vmatpush1.bf16.msra.mxu0 %v625
    %691 = vmatprep.subr.bf16.mxu0 %v628
    %692 = vmatpush1.bf16.msra.mxu0 %v627
    %693 = vmatprep.subr.bf16.mxu0 %v630
    %694 = vmatpush1.bf16.msra.mxu0 %v629
    %695 = vmatprep.subr.bf16.mxu0 %v632
    %696 = vmatpush1.bf16.msra.mxu0 %v631
    %697 = vmatprep.subr.bf16.mxu0 %v634
    %698 = vmatpush1.bf16.msra.mxu0 %v633
    %699 = vmatprep.subr.bf16.mxu0 %v636
    %700 = vmatpush1.bf16.msra.mxu0 %v635
    %701 = vmatprep.subr.bf16.mxu0 %v638
    %702 = vmatpush1.bf16.msra.mxu0 %v637
    %703 = vmatprep.subr.bf16.mxu0 %v640
    %704 = vmatpush1.bf16.msra.mxu0 %v639
    %705 = vmatprep.mubr.bf16.mxu0 %v468
    %706 = vmatmul.mubr.bf16.gmra.mrb[0].mxu0 %v467
    %v707 = vpop.f32.mrb[0].mxu0
    %v708 = vadd.f32 %v506, %v707
    %v709 = vpop.f32.mrb[0].mxu0
    %v710 = vadd.f32 %v510, %v709
    %v711 = vpop.f32.mrb[0].mxu0
    %v712 = vpop.f32.mrb[0].mxu0
    %713 = vdwg.mxu0
    %v714 = vmax.f32 %v708, 0.0
    %v715 = vmax.f32 %v710, 0.0
    %v716 = vld [vmem:[%s9] sm:$0x3]
    %v718 = vlaneseq
    %v719 = vshrl.u32 %v718, 7
    %v720 = vsub.s32 0, %v719
    %v721 = vrot.slane %v716, %v720
    %v722 = vlaneseq
    %v723 = vshrl.u32 %v722, 7
    %v724 = vsub.s32 1, %v723
    %v725 = vrot.slane %v716, %v724
    %v728 = vmul.f32 %v714, %v721
    %v729 = vmul.f32 %v715, %v725
    %v730 = vadd.f32 %v728, %v729
    %731 = vadd.xlane.f32.xlu0 %v730
    %v732 = vpop.xlane.xlu0 %731
    %v733 = vld [vmem:[#allocation2] sm:$0x1]
    %v735 = vlaneseq
    %v736 = vshrl.u32 %v735, 7
    %v737 = vsub.s32 0, %v736
    %v738 = vrot.slane %v733, %v737
    %v740 = vadd.f32 %v732, %v738
    %742 = vset.pattern.permute.xlu0 0
    %743 = vperm.xlu0 %742, %v740
    %v744 = vpop.permute.xlu0 %743
    %v745 = vlaneseq
    %v746 = vand.u32 %v745, 127
    %v747 = vlaneseq
    %v748 = vshrl.u32 %v747, 7
    %v749 = vsub.s32 %v746, %v748
    %v750 = vrot.slane %v744, %v749
    %vm752 = vcmask 57344
    %753 = vst.msk [vmem:[#allocation9] sm:$0x1] %vm752, %v750
    // Predicated region
    $region58: #{tpu_custom_call.1} parent=1 // pred_check
      _
    $region59: #{tpu_custom_call.1} parent=1 // pred_check_branch
      %755 = sbr.rel (0) target = $region61
    $region60: #{tpu_custom_call.1} parent=1 // pred_region
      %s757 = ssub.s32 16, 16
      %758 = vsyncadd [#allocation5], %s757
      %s760 = sshll.u32 [#allocation9], 4
      %s761 = int_to_ptr.vmem [resolvable:$true] %s760
      %763 = dma.vmem_to_hbm [thread:$0]  %s761, 16, %s11, [#allocation5]
    $region61: #{tpu_custom_call.1} parent=1 // pred_fallthru
      _
    // Predicated region
    $region62: #{tpu_custom_call.1} parent=1 // pred_check
      _
    $region63: #{tpu_custom_call.1} parent=1 // pred_check_branch
      %765 = sbr.rel (0) target = $region65
    $region64: #{tpu_custom_call.1} parent=1 // pred_region
      %766 = dma.done [#allocation5], 16
    $region65: #{tpu_custom_call.1} parent=1 // pred_fallthru
      _
    %767 = vsyncpa [#allocation4], 1
    %768 = vsyncpa [#allocation7], 1
    %769 = vsyncpa [#allocation5], 1

</llo_original>
